<compile_context>
chip_gen: v7x
topology: tpu7x:2x2x1
jax: 0.10.0
libtpu: 0.0.40
codegen_flags: <defaults>
</compile_context>

<pallas_src>
import jax
import jax.numpy as jnp
from jax.experimental import pallas as pl
from jax.experimental.pallas import tpu as pltpu


def _round_up(x: int, m: int) -> int:
    return ((x + m - 1) // m) * m


def mlp_kernel(x_ref, w1_ref, b1_ref, w2_ref, b2_ref, o_ref):
    # x_ref : (TILE_B, D_in)   natural-layout activation tile (streamed)
    # w1_ref: (H, D_in)        fc1.weight (PyTorch layout, VMEM-resident)
    # b1_ref: (1, H)           fc1.bias   (f32, resident)
    # w2_ref: (D_out, H)       fc2.weight (PyTorch layout, resident)
    # b2_ref: (1, D_out)       fc2.bias   (f32, resident)
    # o_ref : (TILE_B, D_out)  natural-layout output tile
    dn = (((1,), (1,)), ((), ()))        # contract last axes: a @ b.T (MXU "NT")
    h = jax.lax.dot_general(x_ref[...], w1_ref[...], dn,
                            preferred_element_type=jnp.float32)    # (TILE_B, H)
    h = jnp.maximum(h + b1_ref[...], 0.0)                          # f32 bias+ReLU (VPU)
    out = jax.lax.dot_general(h.astype(w2_ref.dtype), w2_ref[...], dn,
                              preferred_element_type=jnp.float32)  # (TILE_B, D_out)
    out = out + b2_ref[...]
    o_ref[...] = out.astype(o_ref.dtype)


def mlp_forward(x, w1, b1, w2, b2, *, max_tile_b=32768,
                vmem_limit_bytes=48 * 1024 * 1024):
    """Fused MLP forward, matches torch: relu(x @ W1.T + b1) @ W2.T + b2.

    x : (B, D_in)
    w1: (H, D_in)    b1: (H,)      -- PyTorch fc1.weight / fc1.bias layout
    w2: (D_out, H)   b2: (D_out,)  -- PyTorch fc2.weight / fc2.bias layout
    Returns (B, D_out) in x.dtype.

    max_tile_b: batch-tile height (sublane axis).  Tens of thousands keeps the
    kernel at the HBM roofline; ~32-64K f32 fits the 48 MiB VMEM budget on all
    of v5e/v6e/v7x (halve if you push vmem_limit_bytes down further).
    """
    B, D_in = x.shape
    H = w1.shape[0]
    D_out = w2.shape[0]
    assert max_tile_b % 8 == 0, "max_tile_b must be a multiple of 8 (sublane)"

    # Batch tile: big multiple of 8, or the whole (8-rounded) batch when small.
    tile_b = min(int(max_tile_b), _round_up(B, 8))
    n_tiles = pl.cdiv(B, tile_b)
    b_pad = n_tiles * tile_b

    # Only pad when the batch is not tile-aligned (<= 7 rows for B <= max_tile_b).
    x_in = x if b_pad == B else jnp.pad(x, ((0, b_pad - B), (0, 0)))

    b1_c = b1.reshape(1, H).astype(jnp.float32)
    b2_c = b2.reshape(1, D_out).astype(jnp.float32)

    itemsize = jnp.dtype(x.dtype).itemsize
    flops = 2 * b_pad * (D_in * H + H * D_out)
    bytes_accessed = (
        b_pad * D_in * itemsize                         # x stream (dominant)
        + b_pad * D_out * itemsize                      # output writeback
        + w1.size * jnp.dtype(w1.dtype).itemsize
        + w2.size * jnp.dtype(w2.dtype).itemsize
        + (H + D_out) * 4                               # f32 biases
    )

    out = pl.pallas_call(
        mlp_kernel,
        out_shape=jax.ShapeDtypeStruct((b_pad, D_out), x.dtype),
        grid=(n_tiles,),
        in_specs=[
            pl.BlockSpec((tile_b, D_in), lambda i: (i, 0)),   # x: streamed tiles
            pl.BlockSpec((H, D_in), lambda i: (0, 0)),        # W1: resident
            pl.BlockSpec((1, H), lambda i: (0, 0)),           # b1: resident (f32)
            pl.BlockSpec((D_out, H), lambda i: (0, 0)),       # W2: resident
            pl.BlockSpec((1, D_out), lambda i: (0, 0)),       # b2: resident (f32)
        ],
        out_specs=pl.BlockSpec((tile_b, D_out), lambda i: (i, 0)),
        compiler_params=pltpu.CompilerParams(
            dimension_semantics=("parallel",),   # batch tiles shard across TCs on v7x
            vmem_limit_bytes=int(vmem_limit_bytes),
        ),
        cost_estimate=pl.CostEstimate(
            flops=flops, transcendentals=0, bytes_accessed=bytes_accessed),
    )(x_in, w1, b1_c, w2, b2_c)

    return out if b_pad == B else out[:B]


def init_mlp_params(key, d_in, d_out, hidden=32, dtype=jnp.float32):
    """nn.Linear default init (uniform(+-1/sqrt(fan_in))), PyTorch weight layout."""
    k1, k2, k3, k4 = jax.random.split(key, 4)
    bound1 = 1.0 / float(d_in) ** 0.5
    bound2 = 1.0 / float(hidden) ** 0.5
    w1 = jax.random.uniform(k1, (hidden, d_in), dtype, -bound1, bound1)
    b1 = jax.random.uniform(k2, (hidden,), dtype, -bound1, bound1)
    w2 = jax.random.uniform(k3, (d_out, hidden), dtype, -bound2, bound2)
    b2 = jax.random.uniform(k4, (d_out,), dtype, -bound2, bound2)
    return w1, b1, w2, b2


def _reference(x, w1, b1, w2, b2):
    return jnp.maximum(x @ w1.T + b1, 0.0) @ w2.T + b2


if __name__ == "__main__":
    key = jax.random.PRNGKey(0)
    kx, kp, kx2 = jax.random.split(key, 3)

    D_in, D_out = 16, 4
    w1, b1, w2, b2 = init_mlp_params(kp, D_in, D_out)

    # Small case: single tile (block shapes == full array dims).
    B = 8
    x = jax.random.normal(kx, (B, D_in), jnp.float32)
    out = jax.block_until_ready(mlp_forward(x, w1, b1, w2, b2))
    ref = _reference(x, w1, b1, w2, b2)
    assert out.shape == (B, D_out)
    assert jnp.allclose(out, ref, atol=1e-5, rtol=1e-5)

    # Multi-tile case: exercises the batch grid, tail padding and parallel axis.
    B2 = 300
    x2 = jax.random.normal(kx2, (B2, D_in), jnp.float32)
    out2 = jax.block_until_ready(mlp_forward(x2, w1, b1, w2, b2, max_tile_b=128))
    ref2 = _reference(x2, w1, b1, w2, b2)
    assert out2.shape == (B2, D_out)
    assert jnp.allclose(out2, ref2, atol=1e-5, rtol=1e-5)

    print("KERNEL_OK")
</pallas_src>

<mosaic_0001>
module attributes {stable_mosaic.version = 11 : i64} {
  func.func @mlp_kernel(%arg0: i32, %arg1: memref<8x16xf32, #tpu.memory_space<vmem>>, %arg2: memref<32x16xf32, #tpu.memory_space<vmem>>, %arg3: memref<1x32xf32, #tpu.memory_space<vmem>>, %arg4: memref<4x32xf32, #tpu.memory_space<vmem>>, %arg5: memref<1x4xf32, #tpu.memory_space<vmem>>, %arg6: memref<8x4xf32, #tpu.memory_space<vmem>>) attributes {dimension_semantics = [#tpu.dimension_semantics<parallel>], iteration_bounds = array<i64: 1>, scalar_prefetch = 0 : i64, scratch_operands = 0 : i64, tpu.core_type = #tpu.core_type<tc>, window_params = [{transform_indices = @transform_0, window_bounds = array<i64: 8, 16>}, {pipeline_mode = #tpu.pipeline_mode<synchronous>, transform_indices = @transform_1, window_bounds = array<i64: 32, 16>}, {pipeline_mode = #tpu.pipeline_mode<synchronous>, transform_indices = @transform_2, window_bounds = array<i64: 1, 32>}, {pipeline_mode = #tpu.pipeline_mode<synchronous>, transform_indices = @transform_3, window_bounds = array<i64: 4, 32>}, {pipeline_mode = #tpu.pipeline_mode<synchronous>, transform_indices = @transform_4, window_bounds = array<i64: 1, 4>}, {transform_indices = @transform_5, window_bounds = array<i64: 8, 4>}]} {
    %c0 = arith.constant 0 : index
    %c0_0 = arith.constant 0 : index
    %0 = vector.load %arg1[%c0, %c0_0] : memref<8x16xf32, #tpu.memory_space<vmem>>, vector<8x16xf32>
    %c0_1 = arith.constant 0 : index
    %c0_2 = arith.constant 0 : index
    %1 = vector.load %arg2[%c0_1, %c0_2] : memref<32x16xf32, #tpu.memory_space<vmem>>, vector<32x16xf32>
    %cst = arith.constant dense<0.000000e+00> : vector<8x32xf32>
    %2 = tpu.matmul %0, %1, %cst {dimension_numbers = #tpu.dot_dimension_numbers<[1], [1], [0], [0], [0, 0, 1, 0], [], []>} : vector<8x16xf32>, vector<32x16xf32>, vector<8x32xf32> -> vector<8x32xf32>
    %c0_3 = arith.constant 0 : index
    %c0_4 = arith.constant 0 : index
    %3 = vector.load %arg3[%c0_3, %c0_4] : memref<1x32xf32, #tpu.memory_space<vmem>>, vector<1x32xf32>
    %4 = vector.broadcast %3 : vector<1x32xf32> to vector<8x32xf32>
    %5 = arith.addf %2, %4 : vector<8x32xf32>
    %cst_5 = arith.constant 0.000000e+00 : f32
    %6 = vector.broadcast %cst_5 : f32 to vector<8x32xf32>
    %7 = arith.maximumf %5, %6 : vector<8x32xf32>
    %c0_6 = arith.constant 0 : index
    %c0_7 = arith.constant 0 : index
    %8 = vector.load %arg4[%c0_6, %c0_7] : memref<4x32xf32, #tpu.memory_space<vmem>>, vector<4x32xf32>
    %cst_8 = arith.constant dense<0.000000e+00> : vector<8x4xf32>
    %9 = tpu.matmul %7, %8, %cst_8 {dimension_numbers = #tpu.dot_dimension_numbers<[1], [1], [0], [0], [0, 0, 1, 0], [], []>} : vector<8x32xf32>, vector<4x32xf32>, vector<8x4xf32> -> vector<8x4xf32>
    %c0_9 = arith.constant 0 : index
    %c0_10 = arith.constant 0 : index
    %10 = vector.load %arg5[%c0_9, %c0_10] : memref<1x4xf32, #tpu.memory_space<vmem>>, vector<1x4xf32>
    %11 = vector.broadcast %10 : vector<1x4xf32> to vector<8x4xf32>
    %12 = arith.addf %9, %11 : vector<8x4xf32>
    %c0_11 = arith.constant 0 : index
    %c0_12 = arith.constant 0 : index
    %13 = vector.load %arg6[%c0_11, %c0_12] : memref<8x4xf32, #tpu.memory_space<vmem>>, vector<8x4xf32>
    tpu.vector_store %arg6[%c0_11, %c0_12], %12 {strides = array<i32>} : memref<8x4xf32, #tpu.memory_space<vmem>>, vector<8x4xf32>,
    return
  }
  func.func @transform_0(%arg0: i32) -> (i32, i32) {
    %c0_i32 = arith.constant 0 : i32
    %c0_i32_0 = arith.constant 0 : i32
    return %arg0, %c0_i32 : i32, i32
  }
  func.func @transform_1(%arg0: i32) -> (i32, i32) {
    %c0_i32 = arith.constant 0 : i32
    %c0_i32_0 = arith.constant 0 : i32
    %c0_i32_1 = arith.constant 0 : i32
    return %c0_i32, %c0_i32_0 : i32, i32
  }
  func.func @transform_2(%arg0: i32) -> (i32, i32) {
    %c0_i32 = arith.constant 0 : i32
    %c0_i32_0 = arith.constant 0 : i32
    %c0_i32_1 = arith.constant 0 : i32
    return %c0_i32, %c0_i32_0 : i32, i32
  }
  func.func @transform_3(%arg0: i32) -> (i32, i32) {
    %c0_i32 = arith.constant 0 : i32
    %c0_i32_0 = arith.constant 0 : i32
    %c0_i32_1 = arith.constant 0 : i32
    return %c0_i32, %c0_i32_0 : i32, i32
  }
  func.func @transform_4(%arg0: i32) -> (i32, i32) {
    %c0_i32 = arith.constant 0 : i32
    %c0_i32_0 = arith.constant 0 : i32
    %c0_i32_1 = arith.constant 0 : i32
    return %c0_i32, %c0_i32_0 : i32, i32
  }
  func.func @transform_5(%arg0: i32) -> (i32, i32) {
    %c0_i32 = arith.constant 0 : i32
    %c0_i32_0 = arith.constant 0 : i32
    return %arg0, %c0_i32 : i32, i32
  }
}

</mosaic_0001>

<llo_original>
// kernel: tpu_custom_call.1
$region0: #{tpu_custom_call.1}
  #allocation0 [shape = 'u32[]', space=smem, size = 0x4, offset = 0x4, fixed_abs, tag = 'smem constant byte address 0x4 - core index']
  #allocation1 [shape = 'u32[144,128]{1,0:T(1,128)}', space=vmem, size = 0x12000, scoped, tag = 'internal scratch']
  %s0 = inlined_call_operand.vmem [shape: f32[8,16], index: 0, kind: input, shape index: {}]
  %s1 = inlined_call_operand.vmem [shape: f32[32,16], index: 1, kind: input, shape index: {}]
  %s2 = inlined_call_operand.vmem [shape: f32[1,32], index: 2, kind: input, shape index: {}]
  %s3 = inlined_call_operand.vmem [shape: f32[4,32], index: 3, kind: input, shape index: {}]
  %s4 = inlined_call_operand.vmem [shape: f32[1,4], index: 4, kind: input, shape index: {}]
  %s5 = inlined_call_operand.vmem [shape: f32[8,4], index: 5, kind: output, shape index: {}]
  %s6 = sld [smem:[#allocation0]]
  $region30: #{tpu_custom_call.1} parent=0
    _
  %s8 = ssub.s32 1, %s6
  %s9 = scalar_select 0, %s8, %s6
  // Predicated region
  $region2: #{tpu_custom_call.1} parent=0 // pred_check
    _
  $region3: #{tpu_custom_call.1} parent=0 // pred_check_branch
    %11 = sbr.rel (0) target = $region5
  $region4: #{tpu_custom_call.1} parent=0 // pred_region
    _
  $region5: #{tpu_custom_call.1} parent=0 // pred_fallthru
    _
  // Predicated region
  $region6: #{tpu_custom_call.1} parent=0 // pred_check
    _
  $region7: #{tpu_custom_call.1} parent=0 // pred_check_branch
    %13 = sbr.rel (0) target = $region9
  $region8: #{tpu_custom_call.1} parent=0 // pred_region
    _
  $region9: #{tpu_custom_call.1} parent=0 // pred_fallthru
    _
  // Predicated region
  $region10: #{tpu_custom_call.1} parent=0 // pred_check
    _
  $region11: #{tpu_custom_call.1} parent=0 // pred_check_branch
    %15 = sbr.rel (0) target = $region13
  $region12: #{tpu_custom_call.1} parent=0 // pred_region
    _
  $region13: #{tpu_custom_call.1} parent=0 // pred_fallthru
    _
  // Predicated region
  $region14: #{tpu_custom_call.1} parent=0 // pred_check
    _
  $region15: #{tpu_custom_call.1} parent=0 // pred_check_branch
    %17 = sbr.rel (0) target = $region17
  $region16: #{tpu_custom_call.1} parent=0 // pred_region
    _
  $region17: #{tpu_custom_call.1} parent=0 // pred_fallthru
    _
  // Predicated region
  $region18: #{tpu_custom_call.1} parent=0 // pred_check
    _
  $region19: #{tpu_custom_call.1} parent=0 // pred_check_branch
    %19 = sbr.rel (0) target = $region21
  $region20: #{tpu_custom_call.1} parent=0 // pred_region
    _
  $region21: #{tpu_custom_call.1} parent=0 // pred_fallthru
    _
  %v20 = vld [vmem:[%s0] sm:$0xff]
  %v21 = vld [vmem:[%s1] sm:$0xff]
  %v22 = vld [vmem:[%s1 + $0x8] sm:$0xff]
  %v23 = vld [vmem:[%s1 + $0x10] sm:$0xff]
  %v24 = vld [vmem:[%s1 + $0x18] sm:$0xff]
  %v25 = vld [vmem:[%s2] sm:$0x1]
  %v27 = vlaneseq
  %v28 = vshrl.u32 %v27, 7
  %v29 = vsub.s32 0, %v28
  %v30 = vrot.slane %v25, %v29
  %vm32 = vcmask 130048
  %v34 = vsel %vm32, %v20, 0
  %v37 = vsel %vm32, %v21, 0
  %v40 = vsel %vm32, %v22, 0
  %v43 = vsel %vm32, %v23, 0
  %v46 = vsel %vm32, %v24, 0
  %48 = vmatprep.subr.mxu0 0.0
  %49 = vmatpush1.xpose.msra.mxu0 %v37
  %50 = vmatprep.subr.mxu0 0.0
  %51 = vmatpush1.xpose.msra.mxu0 %v40
  %52 = vmatprep.subr.mxu0 0.0
  %53 = vmatpush1.xpose.msra.mxu0 %v43
  %54 = vmatprep.subr.mxu0 0.0
  %55 = vmatpush1.xpose.msra.mxu0 %v46
  %56 = vmatprep.subr.mxu0 0.0
  %57 = vmatpush1.xpose.msra.mxu0 0.0
  %58 = vmatprep.subr.mxu0 0.0
  %59 = vmatpush1.xpose.msra.mxu0 0.0
  %60 = vmatprep.subr.mxu0 0.0
  %61 = vmatpush1.xpose.msra.mxu0 0.0
  %62 = vmatprep.subr.mxu0 0.0
  %63 = vmatpush1.xpose.msra.mxu0 0.0
  %64 = vmatprep.subr.mxu0 0.0
  %65 = vmatpush1.xpose.msra.mxu0 0.0
  %66 = vmatprep.subr.mxu0 0.0
  %67 = vmatpush1.xpose.msra.mxu0 0.0
  %68 = vmatprep.subr.mxu0 0.0
  %69 = vmatpush1.xpose.msra.mxu0 0.0
  %70 = vmatprep.subr.mxu0 0.0
  %71 = vmatpush1.xpose.msra.mxu0 0.0
  %72 = vmatprep.subr.mxu0 0.0
  %73 = vmatpush1.xpose.msra.mxu0 0.0
  %74 = vmatprep.subr.mxu0 0.0
  %75 = vmatpush1.xpose.msra.mxu0 0.0
  %76 = vmatprep.subr.mxu0 0.0
  %77 = vmatpush1.xpose.msra.mxu0 0.0
  %78 = vmatprep.subr.mxu0 0.0
  %79 = vmatpush1.xpose.msra.mxu0 0.0
  %80 = vmatprep.subr.mxu0 0.0
  %81 = vmatpush1.xpose.msra.mxu0 0.0
  %82 = vmatprep.subr.mxu0 0.0
  %83 = vmatpush1.xpose.msra.mxu0 0.0
  %84 = vmatprep.subr.mxu0 0.0
  %85 = vmatpush1.xpose.msra.mxu0 0.0
  %86 = vmatprep.subr.mxu0 0.0
  %87 = vmatpush1.xpose.msra.mxu0 0.0
  %88 = vmatprep.subr.mxu0 0.0
  %89 = vmatpush1.xpose.msra.mxu0 0.0
  %90 = vmatprep.subr.mxu0 0.0
  %91 = vmatpush1.xpose.msra.mxu0 0.0
  %92 = vmatprep.subr.mxu0 0.0
  %93 = vmatpush1.xpose.msra.mxu0 0.0
  %94 = vmatprep.subr.mxu0 0.0
  %95 = vmatpush1.xpose.msra.mxu0 0.0
  %96 = vmatprep.subr.mxu0 0.0
  %97 = vmatpush1.xpose.msra.mxu0 0.0
  %98 = vmatprep.subr.mxu0 0.0
  %99 = vmatpush1.xpose.msra.mxu0 0.0
  %100 = vmatprep.subr.mxu0 0.0
  %101 = vmatpush1.xpose.msra.mxu0 0.0
  %102 = vmatprep.subr.mxu0 0.0
  %103 = vmatpush1.xpose.msra.mxu0 0.0
  %104 = vmatprep.subr.mxu0 0.0
  %105 = vmatpush1.xpose.msra.mxu0 0.0
  %106 = vmatprep.subr.mxu0 0.0
  %107 = vmatpush1.xpose.msra.mxu0 0.0
  %108 = vmatprep.subr.mxu0 0.0
  %109 = vmatpush1.xpose.msra.mxu0 0.0
  %110 = vmatprep.subr.mxu0 0.0
  %111 = vmatpush1.xpose.msra.mxu0 0.0
  %112 = vmatprep.mubr.f32.mxu0 0.0
  %113 = vmatmul.mubr.f32.gmra.mrb[0].mxu0 %v34
  %v114 = vpop.f32.mrb[0].mxu0
  %v115 = vadd.f32 %v30, %v114
  %v116 = vpop.f32.mrb[0].mxu0
  %117 = vdwg.mxu0
  %v118 = vmax.f32 %v115, 0.0
  %v119 = vld [vmem:[%s3] sm:$0xf]
  %v120 = vld [vmem:[%s4] sm:$0x1]
  %v122 = vlaneseq
  %v123 = vshrl.u32 %v122, 7
  %v124 = vsub.s32 0, %v123
  %v125 = vrot.slane %v120, %v124
  %vm127 = vcmask 261120
  %v129 = vsel %vm127, %v118, 0
  %v132 = vsel %vm127, %v119, 0
  %134 = vmatprep.subr.mxu0 0.0
  %135 = vmatpush1.xpose.msra.mxu0 %v132
  %136 = vmatprep.subr.mxu0 0.0
  %137 = vmatpush1.xpose.msra.mxu0 0.0
  %138 = vmatprep.subr.mxu0 0.0
  %139 = vmatpush1.xpose.msra.mxu0 0.0
  %140 = vmatprep.subr.mxu0 0.0
  %141 = vmatpush1.xpose.msra.mxu0 0.0
  %142 = vmatprep.subr.mxu0 0.0
  %143 = vmatpush1.xpose.msra.mxu0 0.0
  %144 = vmatprep.subr.mxu0 0.0
  %145 = vmatpush1.xpose.msra.mxu0 0.0
  %146 = vmatprep.subr.mxu0 0.0
  %147 = vmatpush1.xpose.msra.mxu0 0.0
  %148 = vmatprep.subr.mxu0 0.0
  %149 = vmatpush1.xpose.msra.mxu0 0.0
  %150 = vmatprep.subr.mxu0 0.0
  %151 = vmatpush1.xpose.msra.mxu0 0.0
  %152 = vmatprep.subr.mxu0 0.0
  %153 = vmatpush1.xpose.msra.mxu0 0.0
  %154 = vmatprep.subr.mxu0 0.0
  %155 = vmatpush1.xpose.msra.mxu0 0.0
  %156 = vmatprep.subr.mxu0 0.0
  %157 = vmatpush1.xpose.msra.mxu0 0.0
  %158 = vmatprep.subr.mxu0 0.0
  %159 = vmatpush1.xpose.msra.mxu0 0.0
  %160 = vmatprep.subr.mxu0 0.0
  %161 = vmatpush1.xpose.msra.mxu0 0.0
  %162 = vmatprep.subr.mxu0 0.0
  %163 = vmatpush1.xpose.msra.mxu0 0.0
  %164 = vmatprep.subr.mxu0 0.0
  %165 = vmatpush1.xpose.msra.mxu0 0.0
  %166 = vmatprep.subr.mxu0 0.0
  %167 = vmatpush1.xpose.msra.mxu0 0.0
  %168 = vmatprep.subr.mxu0 0.0
  %169 = vmatpush1.xpose.msra.mxu0 0.0
  %170 = vmatprep.subr.mxu0 0.0
  %171 = vmatpush1.xpose.msra.mxu0 0.0
  %172 = vmatprep.subr.mxu0 0.0
  %173 = vmatpush1.xpose.msra.mxu0 0.0
  %174 = vmatprep.subr.mxu0 0.0
  %175 = vmatpush1.xpose.msra.mxu0 0.0
  %176 = vmatprep.subr.mxu0 0.0
  %177 = vmatpush1.xpose.msra.mxu0 0.0
  %178 = vmatprep.subr.mxu0 0.0
  %179 = vmatpush1.xpose.msra.mxu0 0.0
  %180 = vmatprep.subr.mxu0 0.0
  %181 = vmatpush1.xpose.msra.mxu0 0.0
  %182 = vmatprep.subr.mxu0 0.0
  %183 = vmatpush1.xpose.msra.mxu0 0.0
  %184 = vmatprep.subr.mxu0 0.0
  %185 = vmatpush1.xpose.msra.mxu0 0.0
  %186 = vmatprep.subr.mxu0 0.0
  %187 = vmatpush1.xpose.msra.mxu0 0.0
  %188 = vmatprep.subr.mxu0 0.0
  %189 = vmatpush1.xpose.msra.mxu0 0.0
  %190 = vmatprep.subr.mxu0 0.0
  %191 = vmatpush1.xpose.msra.mxu0 0.0
  %192 = vmatprep.subr.mxu0 0.0
  %193 = vmatpush1.xpose.msra.mxu0 0.0
  %194 = vmatprep.subr.mxu0 0.0
  %195 = vmatpush1.xpose.msra.mxu0 0.0
  %196 = vmatprep.subr.mxu0 0.0
  %197 = vmatpush1.xpose.msra.mxu0 0.0
  %198 = vmatprep.mubr.f32.mxu0 0.0
  %199 = vmatmul.mubr.f32.gmra.mrb[0].mxu0 %v129
  %v200 = vpop.f32.mrb[0].mxu0
  %v201 = vadd.f32 %v125, %v200
  %v202 = vpop.f32.mrb[0].mxu0
  %203 = vdwg.mxu0
  %vm204 = vcmask 31744
  %205 = vst.msk [vmem:[%s5] sm:$0xff] %vm204, %v201
  // Predicated region
  $region22: #{tpu_custom_call.1} parent=0 // pred_check
    _
  $region23: #{tpu_custom_call.1} parent=0 // pred_check_branch
    %207 = sbr.rel (0) target = $region25
  $region24: #{tpu_custom_call.1} parent=0 // pred_region
    _
  $region25: #{tpu_custom_call.1} parent=0 // pred_fallthru
    _
  // Predicated region
  $region26: #{tpu_custom_call.1} parent=0 // pred_check
    _
  $region27: #{tpu_custom_call.1} parent=0 // pred_check_branch
    %209 = sbr.rel (0) target = $region29
  $region28: #{tpu_custom_call.1} parent=0 // pred_region
    _
  $region29: #{tpu_custom_call.1} parent=0 // pred_fallthru
    _

</llo_original>
